<compile_context>
chip_gen: v5e
topology: v5e:2x2
jax: 0.10.0
libtpu: 0.0.40
codegen_flags: <defaults>
</compile_context>

<pallas_src>
from functools import partial

import jax
import jax.numpy as jnp
from jax.experimental import pallas as pl
from jax.experimental.pallas import tpu as pltpu


def attention_kernel(x_ref, y_ref, z_ref,
                     wq_ref, wk_ref, wv_ref, wo_ref, bo_ref,
                     o_ref, *, heads_num, scale):
    B, Nq, Dq = x_ref.shape
    _, Nk, Dk = y_ref.shape
    Dv = z_ref.shape[-1]
    Do = wq_ref.shape[-1]
    C = Do // heads_num

    # Fold batch into the row axis: one big MXU matmul per projection
    # (leading-dim collapse is layout-free since the sublane dim is 8).
    x2 = x_ref[...].reshape(B * Nq, Dq)
    y2 = y_ref[...].reshape(B * Nk, Dk)
    z2 = z_ref[...].reshape(B * Nk, Dv)

    q = jnp.dot(x2, wq_ref[...], preferred_element_type=jnp.float32).reshape(B, Nq, Do)
    k = jnp.dot(y2, wk_ref[...], preferred_element_type=jnp.float32).reshape(B, Nk, Do)
    v = jnp.dot(z2, wv_ref[...], preferred_element_type=jnp.float32).reshape(B, Nk, Do)

    # Per-head attention, batched over the batch axis. Contraction is on the
    # last axis -> no explicit transpose of K.
    head_outs = []
    for h in range(heads_num):
        lo = h * C
        qh = q[:, :, lo:lo + C]                                      # (B, Nq, C)
        kh = k[:, :, lo:lo + C]                                      # (B, Nk, C)
        vh = v[:, :, lo:lo + C]                                      # (B, Nk, C)

        s = jnp.einsum('bqc,bkc->bqk', qh, kh,
                       preferred_element_type=jnp.float32) * scale   # (B, Nq, Nk)
        # Numerically-stable softmax along the key axis (exact normalization).
        s = s - jnp.max(s, axis=-1, keepdims=True)
        p = jnp.exp(s)
        p = p / jnp.sum(p, axis=-1, keepdims=True)

        head_outs.append(jnp.einsum('bqk,bkc->bqc', p, vh,
                                    preferred_element_type=jnp.float32))  # (B, Nq, C)

    # 'b h n c -> b n (h c)': heads are already feature-major, just concat.
    scores = jnp.concatenate(head_outs, axis=-1)                      # (B, Nq, Do)

    # Output projection (with bias) over all batch rows at once.
    out = jnp.dot(scores.reshape(B * Nq, Do), wo_ref[...],
                  preferred_element_type=jnp.float32) + bo_ref[...]
    o_ref[...] = out.reshape(B, Nq, Do).astype(o_ref.dtype)


def pallas_attention(x, y, z, wq_t, wk_t, wv_t, wo_t, bo, heads_num):
    B, Nq, _ = x.shape
    Do = wq_t.shape[1]
    scale = float(Do) ** (-0.5)

    kernel = partial(attention_kernel, heads_num=heads_num, scale=scale)

    vmem = pl.BlockSpec(memory_space=pltpu.MemorySpace.VMEM)
    # Single grid step (no grid): everything fits in VMEM at these shapes, so
    # the whole problem is one fused kernel invocation.
    return pl.pallas_call(
        kernel,
        out_shape=jax.ShapeDtypeStruct((B, Nq, Do), x.dtype),
        in_specs=[vmem] * 8,
        out_specs=vmem,
    )(x, y, z, wq_t, wk_t, wv_t, wo_t, bo)


def reference_attention(x, y, z, wq_t, wk_t, wv_t, wo_t, bo, heads_num):
    """Pure-JAX reference mirroring the PyTorch forward (true f32 precision)."""
    HI = jax.lax.Precision.HIGHEST
    B, Nq, _ = x.shape
    Do = wq_t.shape[1]
    C = Do // heads_num
    scale = float(Do) ** (-0.5)

    def split_heads(t):  # (B, N, Do) -> (B, H, N, C)  ['b n (h c) -> b h n c']
        B_, N_, _ = t.shape
        return t.reshape(B_, N_, heads_num, C).transpose(0, 2, 1, 3)

    q = split_heads(jnp.matmul(x, wq_t, precision=HI))
    k = split_heads(jnp.matmul(y, wk_t, precision=HI))
    v = split_heads(jnp.matmul(z, wv_t, precision=HI))
    att = jax.nn.softmax(
        jnp.einsum("bhnc,bhmc->bhnm", q, k, precision=HI) * scale, axis=-1)
    sc = jnp.einsum("bhnm,bhmc->bhnc", att, v, precision=HI)   # (B, H, Nq, C)
    sc = sc.transpose(0, 2, 1, 3).reshape(B, Nq, Do)           # 'b h n c -> b n (h c)'
    return jnp.matmul(sc, wo_t, precision=HI) + bo[0]


if __name__ == "__main__":
    # Small shapes consistent with the module's forward.
    B, Nq, Nk = 2, 8, 8
    query_dim, key_dim, value_dim = 32, 32, 32
    output_dim, heads_num = 32, 4

    key = jax.random.PRNGKey(0)
    kx, ky, kz, kq, kk, kv, ko, kb = jax.random.split(key, 8)

    x = jax.random.normal(kx, (B, Nq, query_dim), dtype=jnp.float32)
    y = jax.random.normal(ky, (B, Nk, key_dim), dtype=jnp.float32)
    z = jax.random.normal(kz, (B, Nk, value_dim), dtype=jnp.float32)

    # Deterministic parameter init (nn.Linear weight is (out, in); we store W^T = (in, out)).
    wq_t = (jax.random.normal(kq, (query_dim, output_dim), dtype=jnp.float32)
            * (query_dim ** -0.5))
    wk_t = (jax.random.normal(kk, (key_dim, output_dim), dtype=jnp.float32)
            * (key_dim ** -0.5))
    wv_t = (jax.random.normal(kv, (value_dim, output_dim), dtype=jnp.float32)
            * (value_dim ** -0.5))
    wo_t = (jax.random.normal(ko, (output_dim, output_dim), dtype=jnp.float32)
            * (output_dim ** -0.5))
    bo = jax.random.normal(kb, (1, output_dim), dtype=jnp.float32) * 0.01

    out = pallas_attention(x, y, z, wq_t, wk_t, wv_t, wo_t, bo, heads_num)
    out = jax.block_until_ready(out)

    ref = reference_attention(x, y, z, wq_t, wk_t, wv_t, wo_t, bo, heads_num)
    assert out.shape == (B, Nq, output_dim)
    # Tolerance covers the kernel's default-precision MXU rounding (the
    # reference is exact f32); any semantic bug would be O(1) off.
    assert jnp.allclose(out, ref, atol=5e-2, rtol=5e-2), "mismatch vs reference"

    print("KERNEL_OK")
</pallas_src>

<mosaic_0001>
module attributes {stable_mosaic.version = 11 : i64} {
  func.func @attention_kernel(%arg0: memref<2x8x32xf32, #tpu.memory_space<vmem>>, %arg1: memref<2x8x32xf32, #tpu.memory_space<vmem>>, %arg2: memref<2x8x32xf32, #tpu.memory_space<vmem>>, %arg3: memref<32x32xf32, #tpu.memory_space<vmem>>, %arg4: memref<32x32xf32, #tpu.memory_space<vmem>>, %arg5: memref<32x32xf32, #tpu.memory_space<vmem>>, %arg6: memref<32x32xf32, #tpu.memory_space<vmem>>, %arg7: memref<1x32xf32, #tpu.memory_space<vmem>>, %arg8: memref<2x8x32xf32, #tpu.memory_space<vmem>>) attributes {dimension_semantics = [], scalar_prefetch = 0 : i64, scratch_operands = 0 : i64, tpu.core_type = #tpu.core_type<tc>} {
    %c0 = arith.constant 0 : index
    %c0_0 = arith.constant 0 : index
    %c0_1 = arith.constant 0 : index
    %0 = vector.load %arg0[%c0, %c0_0, %c0_1] : memref<2x8x32xf32, #tpu.memory_space<vmem>>, vector<2x8x32xf32>
    %1 = vector.shape_cast %0 : vector<2x8x32xf32> to vector<16x32xf32>
    %c0_2 = arith.constant 0 : index
    %c0_3 = arith.constant 0 : index
    %c0_4 = arith.constant 0 : index
    %2 = vector.load %arg1[%c0_2, %c0_3, %c0_4] : memref<2x8x32xf32, #tpu.memory_space<vmem>>, vector<2x8x32xf32>
    %3 = vector.shape_cast %2 : vector<2x8x32xf32> to vector<16x32xf32>
    %c0_5 = arith.constant 0 : index
    %c0_6 = arith.constant 0 : index
    %c0_7 = arith.constant 0 : index
    %4 = vector.load %arg2[%c0_5, %c0_6, %c0_7] : memref<2x8x32xf32, #tpu.memory_space<vmem>>, vector<2x8x32xf32>
    %5 = vector.shape_cast %4 : vector<2x8x32xf32> to vector<16x32xf32>
    %c0_8 = arith.constant 0 : index
    %c0_9 = arith.constant 0 : index
    %6 = vector.load %arg3[%c0_8, %c0_9] : memref<32x32xf32, #tpu.memory_space<vmem>>, vector<32x32xf32>
    %cst = arith.constant dense<0.000000e+00> : vector<16x32xf32>
    %7 = tpu.matmul %1, %6, %cst {dimension_numbers = #tpu.dot_dimension_numbers<[1], [0], [0], [1], [0, 0, 1, 1], [], []>} : vector<16x32xf32>, vector<32x32xf32>, vector<16x32xf32> -> vector<16x32xf32>
    %8 = vector.shape_cast %7 : vector<16x32xf32> to vector<2x8x32xf32>
    %c0_10 = arith.constant 0 : index
    %c0_11 = arith.constant 0 : index
    %9 = vector.load %arg4[%c0_10, %c0_11] : memref<32x32xf32, #tpu.memory_space<vmem>>, vector<32x32xf32>
    %cst_12 = arith.constant dense<0.000000e+00> : vector<16x32xf32>
    %10 = tpu.matmul %3, %9, %cst_12 {dimension_numbers = #tpu.dot_dimension_numbers<[1], [0], [0], [1], [0, 0, 1, 1], [], []>} : vector<16x32xf32>, vector<32x32xf32>, vector<16x32xf32> -> vector<16x32xf32>
    %11 = vector.shape_cast %10 : vector<16x32xf32> to vector<2x8x32xf32>
    %c0_13 = arith.constant 0 : index
    %c0_14 = arith.constant 0 : index
    %12 = vector.load %arg5[%c0_13, %c0_14] : memref<32x32xf32, #tpu.memory_space<vmem>>, vector<32x32xf32>
    %cst_15 = arith.constant dense<0.000000e+00> : vector<16x32xf32>
    %13 = tpu.matmul %5, %12, %cst_15 {dimension_numbers = #tpu.dot_dimension_numbers<[1], [0], [0], [1], [0, 0, 1, 1], [], []>} : vector<16x32xf32>, vector<32x32xf32>, vector<16x32xf32> -> vector<16x32xf32>
    %14 = vector.shape_cast %13 : vector<16x32xf32> to vector<2x8x32xf32>
    %15 = vector.extract_strided_slice %8 {offsets = [0, 0, 0], sizes = [2, 8, 8], strides = [1, 1, 1]} : vector<2x8x32xf32> to vector<2x8x8xf32>
    %16 = vector.extract_strided_slice %11 {offsets = [0, 0, 0], sizes = [2, 8, 8], strides = [1, 1, 1]} : vector<2x8x32xf32> to vector<2x8x8xf32>
    %17 = vector.extract_strided_slice %14 {offsets = [0, 0, 0], sizes = [2, 8, 8], strides = [1, 1, 1]} : vector<2x8x32xf32> to vector<2x8x8xf32>
    "tpu.trace_start"() <{level = 10 : i32, message = "bqc,bkc->bqk"}> : () -> ()
    %cst_16 = arith.constant dense<0.000000e+00> : vector<2x8x8xf32>
    %18 = tpu.matmul %15, %16, %cst_16 {dimension_numbers = #tpu.dot_dimension_numbers<[2], [2], [1], [1], [0, 0, 0, 1, 1, 1], [0], [0]>} : vector<2x8x8xf32>, vector<2x8x8xf32>, vector<2x8x8xf32> -> vector<2x8x8xf32>
    "tpu.trace_stop"() : () -> ()
    %cst_17 = arith.constant 0.176776692 : f32
    %19 = vector.broadcast %cst_17 : f32 to vector<2x8x8xf32>
    %20 = arith.mulf %18, %19 : vector<2x8x8xf32>
    %cst_18 = arith.constant dense<0xFF800000> : vector<2x8xf32>
    %21 = vector.multi_reduction <maximumf>, %20, %cst_18 [2] : vector<2x8x8xf32> to vector<2x8xf32>
    %22 = vector.shape_cast %21 : vector<2x8xf32> to vector<2x8x1xf32>
    %23 = vector.broadcast %22 : vector<2x8x1xf32> to vector<2x8x8xf32>
    %24 = arith.subf %20, %23 : vector<2x8x8xf32>
    %25 = math.exp %24 : vector<2x8x8xf32>
    %cst_19 = arith.constant dense<0.000000e+00> : vector<2x8xf32>
    %26 = vector.multi_reduction <add>, %25, %cst_19 [2] : vector<2x8x8xf32> to vector<2x8xf32>
    %27 = vector.shape_cast %26 : vector<2x8xf32> to vector<2x8x1xf32>
    %28 = vector.broadcast %27 : vector<2x8x1xf32> to vector<2x8x8xf32>
    %29 = arith.divf %25, %28 : vector<2x8x8xf32>
    "tpu.trace_start"() <{level = 10 : i32, message = "bqk,bkc->bqc"}> : () -> ()
    %cst_20 = arith.constant dense<0.000000e+00> : vector<2x8x8xf32>
    %30 = tpu.matmul %29, %17, %cst_20 {dimension_numbers = #tpu.dot_dimension_numbers<[2], [1], [1], [2], [0, 0, 0, 1, 1, 2], [0], [0]>} : vector<2x8x8xf32>, vector<2x8x8xf32>, vector<2x8x8xf32> -> vector<2x8x8xf32>
    "tpu.trace_stop"() : () -> ()
    %31 = vector.extract_strided_slice %8 {offsets = [0, 0, 8], sizes = [2, 8, 8], strides = [1, 1, 1]} : vector<2x8x32xf32> to vector<2x8x8xf32>
    %32 = vector.extract_strided_slice %11 {offsets = [0, 0, 8], sizes = [2, 8, 8], strides = [1, 1, 1]} : vector<2x8x32xf32> to vector<2x8x8xf32>
    %33 = vector.extract_strided_slice %14 {offsets = [0, 0, 8], sizes = [2, 8, 8], strides = [1, 1, 1]} : vector<2x8x32xf32> to vector<2x8x8xf32>
    "tpu.trace_start"() <{level = 10 : i32, message = "bqc,bkc->bqk"}> : () -> ()
    %cst_21 = arith.constant dense<0.000000e+00> : vector<2x8x8xf32>
    %34 = tpu.matmul %31, %32, %cst_21 {dimension_numbers = #tpu.dot_dimension_numbers<[2], [2], [1], [1], [0, 0, 0, 1, 1, 1], [0], [0]>} : vector<2x8x8xf32>, vector<2x8x8xf32>, vector<2x8x8xf32> -> vector<2x8x8xf32>
    "tpu.trace_stop"() : () -> ()
    %cst_22 = arith.constant 0.176776692 : f32
    %35 = vector.broadcast %cst_22 : f32 to vector<2x8x8xf32>
    %36 = arith.mulf %34, %35 : vector<2x8x8xf32>
    %cst_23 = arith.constant dense<0xFF800000> : vector<2x8xf32>
    %37 = vector.multi_reduction <maximumf>, %36, %cst_23 [2] : vector<2x8x8xf32> to vector<2x8xf32>
    %38 = vector.shape_cast %37 : vector<2x8xf32> to vector<2x8x1xf32>
    %39 = vector.broadcast %38 : vector<2x8x1xf32> to vector<2x8x8xf32>
    %40 = arith.subf %36, %39 : vector<2x8x8xf32>
    %41 = math.exp %40 : vector<2x8x8xf32>
    %cst_24 = arith.constant dense<0.000000e+00> : vector<2x8xf32>
    %42 = vector.multi_reduction <add>, %41, %cst_24 [2] : vector<2x8x8xf32> to vector<2x8xf32>
    %43 = vector.shape_cast %42 : vector<2x8xf32> to vector<2x8x1xf32>
    %44 = vector.broadcast %43 : vector<2x8x1xf32> to vector<2x8x8xf32>
    %45 = arith.divf %41, %44 : vector<2x8x8xf32>
    "tpu.trace_start"() <{level = 10 : i32, message = "bqk,bkc->bqc"}> : () -> ()
    %cst_25 = arith.constant dense<0.000000e+00> : vector<2x8x8xf32>
    %46 = tpu.matmul %45, %33, %cst_25 {dimension_numbers = #tpu.dot_dimension_numbers<[2], [1], [1], [2], [0, 0, 0, 1, 1, 2], [0], [0]>} : vector<2x8x8xf32>, vector<2x8x8xf32>, vector<2x8x8xf32> -> vector<2x8x8xf32>
    "tpu.trace_stop"() : () -> ()
    %47 = vector.extract_strided_slice %8 {offsets = [0, 0, 16], sizes = [2, 8, 8], strides = [1, 1, 1]} : vector<2x8x32xf32> to vector<2x8x8xf32>
    %48 = vector.extract_strided_slice %11 {offsets = [0, 0, 16], sizes = [2, 8, 8], strides = [1, 1, 1]} : vector<2x8x32xf32> to vector<2x8x8xf32>
    %49 = vector.extract_strided_slice %14 {offsets = [0, 0, 16], sizes = [2, 8, 8], strides = [1, 1, 1]} : vector<2x8x32xf32> to vector<2x8x8xf32>
    "tpu.trace_start"() <{level = 10 : i32, message = "bqc,bkc->bqk"}> : () -> ()
    %cst_26 = arith.constant dense<0.000000e+00> : vector<2x8x8xf32>
    %50 = tpu.matmul %47, %48, %cst_26 {dimension_numbers = #tpu.dot_dimension_numbers<[2], [2], [1], [1], [0, 0, 0, 1, 1, 1], [0], [0]>} : vector<2x8x8xf32>, vector<2x8x8xf32>, vector<2x8x8xf32> -> vector<2x8x8xf32>
    "tpu.trace_stop"() : () -> ()
    %cst_27 = arith.constant 0.176776692 : f32
    %51 = vector.broadcast %cst_27 : f32 to vector<2x8x8xf32>
    %52 = arith.mulf %50, %51 : vector<2x8x8xf32>
    %cst_28 = arith.constant dense<0xFF800000> : vector<2x8xf32>
    %53 = vector.multi_reduction <maximumf>, %52, %cst_28 [2] : vector<2x8x8xf32> to vector<2x8xf32>
    %54 = vector.shape_cast %53 : vector<2x8xf32> to vector<2x8x1xf32>
    %55 = vector.broadcast %54 : vector<2x8x1xf32> to vector<2x8x8xf32>
    %56 = arith.subf %52, %55 : vector<2x8x8xf32>
    %57 = math.exp %56 : vector<2x8x8xf32>
    %cst_29 = arith.constant dense<0.000000e+00> : vector<2x8xf32>
    %58 = vector.multi_reduction <add>, %57, %cst_29 [2] : vector<2x8x8xf32> to vector<2x8xf32>
    %59 = vector.shape_cast %58 : vector<2x8xf32> to vector<2x8x1xf32>
    %60 = vector.broadcast %59 : vector<2x8x1xf32> to vector<2x8x8xf32>
    %61 = arith.divf %57, %60 : vector<2x8x8xf32>
    "tpu.trace_start"() <{level = 10 : i32, message = "bqk,bkc->bqc"}> : () -> ()
    %cst_30 = arith.constant dense<0.000000e+00> : vector<2x8x8xf32>
    %62 = tpu.matmul %61, %49, %cst_30 {dimension_numbers = #tpu.dot_dimension_numbers<[2], [1], [1], [2], [0, 0, 0, 1, 1, 2], [0], [0]>} : vector<2x8x8xf32>, vector<2x8x8xf32>, vector<2x8x8xf32> -> vector<2x8x8xf32>
    "tpu.trace_stop"() : () -> ()
    %63 = vector.extract_strided_slice %8 {offsets = [0, 0, 24], sizes = [2, 8, 8], strides = [1, 1, 1]} : vector<2x8x32xf32> to vector<2x8x8xf32>
    %64 = vector.extract_strided_slice %11 {offsets = [0, 0, 24], sizes = [2, 8, 8], strides = [1, 1, 1]} : vector<2x8x32xf32> to vector<2x8x8xf32>
    %65 = vector.extract_strided_slice %14 {offsets = [0, 0, 24], sizes = [2, 8, 8], strides = [1, 1, 1]} : vector<2x8x32xf32> to vector<2x8x8xf32>
    "tpu.trace_start"() <{level = 10 : i32, message = "bqc,bkc->bqk"}> : () -> ()
    %cst_31 = arith.constant dense<0.000000e+00> : vector<2x8x8xf32>
    %66 = tpu.matmul %63, %64, %cst_31 {dimension_numbers = #tpu.dot_dimension_numbers<[2], [2], [1], [1], [0, 0, 0, 1, 1, 1], [0], [0]>} : vector<2x8x8xf32>, vector<2x8x8xf32>, vector<2x8x8xf32> -> vector<2x8x8xf32>
    "tpu.trace_stop"() : () -> ()
    %cst_32 = arith.constant 0.176776692 : f32
    %67 = vector.broadcast %cst_32 : f32 to vector<2x8x8xf32>
    %68 = arith.mulf %66, %67 : vector<2x8x8xf32>
    %cst_33 = arith.constant dense<0xFF800000> : vector<2x8xf32>
    %69 = vector.multi_reduction <maximumf>, %68, %cst_33 [2] : vector<2x8x8xf32> to vector<2x8xf32>
    %70 = vector.shape_cast %69 : vector<2x8xf32> to vector<2x8x1xf32>
    %71 = vector.broadcast %70 : vector<2x8x1xf32> to vector<2x8x8xf32>
    %72 = arith.subf %68, %71 : vector<2x8x8xf32>
    %73 = math.exp %72 : vector<2x8x8xf32>
    %cst_34 = arith.constant dense<0.000000e+00> : vector<2x8xf32>
    %74 = vector.multi_reduction <add>, %73, %cst_34 [2] : vector<2x8x8xf32> to vector<2x8xf32>
    %75 = vector.shape_cast %74 : vector<2x8xf32> to vector<2x8x1xf32>
    %76 = vector.broadcast %75 : vector<2x8x1xf32> to vector<2x8x8xf32>
    %77 = arith.divf %73, %76 : vector<2x8x8xf32>
    "tpu.trace_start"() <{level = 10 : i32, message = "bqk,bkc->bqc"}> : () -> ()
    %cst_35 = arith.constant dense<0.000000e+00> : vector<2x8x8xf32>
    %78 = tpu.matmul %77, %65, %cst_35 {dimension_numbers = #tpu.dot_dimension_numbers<[2], [1], [1], [2], [0, 0, 0, 1, 1, 2], [0], [0]>} : vector<2x8x8xf32>, vector<2x8x8xf32>, vector<2x8x8xf32> -> vector<2x8x8xf32>
    "tpu.trace_stop"() : () -> ()
    %79 = tpu.concatenate %30, %46, %62, %78 in 2 : vector<2x8x8xf32>, vector<2x8x8xf32>, vector<2x8x8xf32>, vector<2x8x8xf32> -> vector<2x8x32xf32>
    %80 = vector.shape_cast %79 : vector<2x8x32xf32> to vector<16x32xf32>
    %c0_36 = arith.constant 0 : index
    %c0_37 = arith.constant 0 : index
    %81 = vector.load %arg6[%c0_36, %c0_37] : memref<32x32xf32, #tpu.memory_space<vmem>>, vector<32x32xf32>
    %cst_38 = arith.constant dense<0.000000e+00> : vector<16x32xf32>
    %82 = tpu.matmul %80, %81, %cst_38 {dimension_numbers = #tpu.dot_dimension_numbers<[1], [0], [0], [1], [0, 0, 1, 1], [], []>} : vector<16x32xf32>, vector<32x32xf32>, vector<16x32xf32> -> vector<16x32xf32>
    %c0_39 = arith.constant 0 : index
    %c0_40 = arith.constant 0 : index
    %83 = vector.load %arg7[%c0_39, %c0_40] : memref<1x32xf32, #tpu.memory_space<vmem>>, vector<1x32xf32>
    %84 = vector.broadcast %83 : vector<1x32xf32> to vector<16x32xf32>
    %85 = arith.addf %82, %84 : vector<16x32xf32>
    %86 = vector.shape_cast %85 : vector<16x32xf32> to vector<2x8x32xf32>
    %c0_41 = arith.constant 0 : index
    %c0_42 = arith.constant 0 : index
    %c0_43 = arith.constant 0 : index
    %87 = vector.load %arg8[%c0_41, %c0_42, %c0_43] : memref<2x8x32xf32, #tpu.memory_space<vmem>>, vector<2x8x32xf32>
    tpu.vector_store %arg8[%c0_41, %c0_42, %c0_43], %86 {strides = array<i32>} : memref<2x8x32xf32, #tpu.memory_space<vmem>>, vector<2x8x32xf32>,
    return
  }
}

</mosaic_0001>

<llo_original>
// kernel: tpu_custom_call.1
$region0: #{tpu_custom_call.1}
  #allocation0 [shape = 'u32[]', space=smem, size = 0x4, offset = 0x4, fixed_abs, tag = 'smem constant byte address 0x4 - core index']
  #allocation1 [shape = 'u32[72,128]{1,0:T(1,128)}', space=vmem, size = 0x9000, scoped, tag = 'internal scratch']
  %s0 = inlined_call_operand.hbm [shape: f32[2,8,32], index: 0, kind: input, shape index: {}]
  %s1 = inlined_call_operand.hbm [shape: f32[2,8,32], index: 1, kind: input, shape index: {}]
  %s2 = inlined_call_operand.hbm [shape: f32[2,8,32], index: 2, kind: input, shape index: {}]
  %s3 = inlined_call_operand.hbm [shape: f32[32,32], index: 3, kind: input, shape index: {}]
  %s4 = inlined_call_operand.hbm [shape: f32[32,32], index: 4, kind: input, shape index: {}]
  %s5 = inlined_call_operand.hbm [shape: f32[32,32], index: 5, kind: input, shape index: {}]
  %s6 = inlined_call_operand.hbm [shape: f32[32,32], index: 6, kind: input, shape index: {}]
  %s7 = inlined_call_operand.vmem [shape: f32[1,32], index: 7, kind: input, shape index: {}]
  %s8 = inlined_call_operand.hbm [shape: f32[2,8,32], index: 8, kind: output, shape index: {}]
  %s9 = sld [smem:[#allocation0]]
  $region70: #{tpu_custom_call.1} parent=0
    _
  %s11 = ssub.s32 1, %s9
  %s12 = scalar_select 0, %s11, %s9
  $region1: #{tpu_custom_call.1} parent=0
    #allocation2 [shape = 'u8[8192]{0}', space=vmem, size = 0x2000, scoped, tag = 'input window, operand 0, single buffered']
    #allocation3 [shape = 's32[1]{0}', space=sflag, size = 0x4, scoped, tag = 'scoped memory for tpu_custom_call.1']
    #allocation4 [shape = 's32[1]{0}', space=sflag, size = 0x4, scoped, tag = 'scoped memory for tpu_custom_call.1']
    #allocation5 [shape = 'u8[8192]{0}', space=vmem, size = 0x2000, scoped, tag = 'input window, operand 1, single buffered']
    #allocation6 [shape = 's32[1]{0}', space=sflag, size = 0x4, scoped, tag = 'scoped memory for tpu_custom_call.1']
    #allocation7 [shape = 'u8[8192]{0}', space=vmem, size = 0x2000, scoped, tag = 'input window, operand 2, single buffered']
    #allocation8 [shape = 'u8[16384]{0}', space=vmem, size = 0x4000, scoped, tag = 'input window, operand 3, single buffered']
    #allocation9 [shape = 's32[1]{0}', space=sflag, size = 0x4, scoped, tag = 'scoped memory for tpu_custom_call.1']
    #allocation10 [shape = 'u8[16384]{0}', space=vmem, size = 0x4000, scoped, tag = 'input window, operand 4, single buffered']
    #allocation11 [shape = 'u8[16384]{0}', space=vmem, size = 0x4000, scoped, tag = 'input window, operand 5, single buffered']
    #allocation12 [shape = 's32[1]{0}', space=sflag, size = 0x4, scoped, tag = 'scoped memory for tpu_custom_call.1']
    #allocation13 [shape = 'u8[16384]{0}', space=vmem, size = 0x4000, scoped, tag = 'input window, operand 6, single buffered']
    #allocation14 [shape = 'u8[8192]{0}', space=vmem, size = 0x2000, scoped, tag = 'output window, operand 0, single buffered']
    %13 = vsyncpa [#allocation3], 0
    %14 = vsyncpa [#allocation6], 0
    %15 = vsyncpa [#allocation9], 0
    %16 = vsyncpa [#allocation12], 0
    %17 = vsyncpa [#allocation4], 0
    // Predicated region
    $region2: #{tpu_custom_call.1} parent=1 // pred_check
      _
    $region3: #{tpu_custom_call.1} parent=1 // pred_check_branch
      %19 = sbr.rel (0) target = $region5
    $region4: #{tpu_custom_call.1} parent=1 // pred_region
      %21 = vsyncadd [#allocation3], 0
      %s22 = sshll.u32 %s0, 4
      %s23 = int_to_ptr.hbm [resolvable:$true] %s22
      %s24 = sshll.u32 [#allocation2], 4
      %s25 = int_to_ptr.vmem [resolvable:$true] %s24
      %30 = dma.hbm_to_vmem [thread:$0]  %s23, 256, %s25, [#allocation3], 128, 128, 8
    $region5: #{tpu_custom_call.1} parent=1 // pred_fallthru
      _
    // Predicated region
    $region6: #{tpu_custom_call.1} parent=1 // pred_check
      _
    $region7: #{tpu_custom_call.1} parent=1 // pred_check_branch
      %32 = sbr.rel (0) target = $region9
    $region8: #{tpu_custom_call.1} parent=1 // pred_region
      %34 = vsyncadd [#allocation6], 0
      %s35 = sshll.u32 %s1, 4
      %s36 = int_to_ptr.hbm [resolvable:$true] %s35
      %s37 = sshll.u32 [#allocation5], 4
      %s38 = int_to_ptr.vmem [resolvable:$true] %s37
      %43 = dma.hbm_to_vmem [thread:$0]  %s36, 256, %s38, [#allocation6], 128, 128, 8
    $region9: #{tpu_custom_call.1} parent=1 // pred_fallthru
      _
    // Predicated region
    $region10: #{tpu_custom_call.1} parent=1 // pred_check
      _
    $region11: #{tpu_custom_call.1} parent=1 // pred_check_branch
      %45 = sbr.rel (0) target = $region13
    $region12: #{tpu_custom_call.1} parent=1 // pred_region
      %47 = vsyncadd [#allocation6], 0
      %s48 = sshll.u32 %s2, 4
      %s49 = int_to_ptr.hbm [resolvable:$true] %s48
      %s50 = sshll.u32 [#allocation7], 4
      %s51 = int_to_ptr.vmem [resolvable:$true] %s50
      %56 = dma.hbm_to_vmem [thread:$0]  %s49, 256, %s51, [#allocation6], 128, 128, 8
    $region13: #{tpu_custom_call.1} parent=1 // pred_fallthru
      _
    // Predicated region
    $region14: #{tpu_custom_call.1} parent=1 // pred_check
      _
    $region15: #{tpu_custom_call.1} parent=1 // pred_check_branch
      %58 = sbr.rel (0) target = $region17
    $region16: #{tpu_custom_call.1} parent=1 // pred_region
      %60 = vsyncadd [#allocation9], 0
      %s61 = sshll.u32 %s3, 4
      %s62 = int_to_ptr.hbm [resolvable:$true] %s61
      %s63 = sshll.u32 [#allocation8], 4
      %s64 = int_to_ptr.vmem [resolvable:$true] %s63
      %69 = dma.hbm_to_vmem [thread:$0]  %s62, 512, %s64, [#allocation9], 128, 128, 8
    $region17: #{tpu_custom_call.1} parent=1 // pred_fallthru
      _
    // Predicated region
    $region18: #{tpu_custom_call.1} parent=1 // pred_check
      _
    $region19: #{tpu_custom_call.1} parent=1 // pred_check_branch
      %71 = sbr.rel (0) target = $region21
    $region20: #{tpu_custom_call.1} parent=1 // pred_region
      %73 = vsyncadd [#allocation9], 0
      %s74 = sshll.u32 %s4, 4
      %s75 = int_to_ptr.hbm [resolvable:$true] %s74
      %s76 = sshll.u32 [#allocation10], 4
      %s77 = int_to_ptr.vmem [resolvable:$true] %s76
      %82 = dma.hbm_to_vmem [thread:$0]  %s75, 512, %s77, [#allocation9], 128, 128, 8
    $region21: #{tpu_custom_call.1} parent=1 // pred_fallthru
      _
    // Predicated region
    $region22: #{tpu_custom_call.1} parent=1 // pred_check
      _
    $region23: #{tpu_custom_call.1} parent=1 // pred_check_branch
      %84 = sbr.rel (0) target = $region25
    $region24: #{tpu_custom_call.1} parent=1 // pred_region
      %86 = vsyncadd [#allocation12], 0
      %s87 = sshll.u32 %s5, 4
      %s88 = int_to_ptr.hbm [resolvable:$true] %s87
      %s89 = sshll.u32 [#allocation11], 4
      %s90 = int_to_ptr.vmem [resolvable:$true] %s89
      %95 = dma.hbm_to_vmem [thread:$0]  %s88, 512, %s90, [#allocation12], 128, 128, 8
    $region25: #{tpu_custom_call.1} parent=1 // pred_fallthru
      _
    // Predicated region
    $region26: #{tpu_custom_call.1} parent=1 // pred_check
      _
    $region27: #{tpu_custom_call.1} parent=1 // pred_check_branch
      %97 = sbr.rel (0) target = $region29
    $region28: #{tpu_custom_call.1} parent=1 // pred_region
      %99 = vsyncadd [#allocation12], 0
      %s100 = sshll.u32 %s6, 4
      %s101 = int_to_ptr.hbm [resolvable:$true] %s100
      %s102 = sshll.u32 [#allocation13], 4
      %s103 = int_to_ptr.vmem [resolvable:$true] %s102
      %108 = dma.hbm_to_vmem [thread:$0]  %s101, 512, %s103, [#allocation12], 128, 128, 8
    $region29: #{tpu_custom_call.1} parent=1 // pred_fallthru
      _
    // Predicated region
    $region30: #{tpu_custom_call.1} parent=1 // pred_check
      _
    $region31: #{tpu_custom_call.1} parent=1 // pred_check_branch
      %110 = sbr.rel (0) target = $region33
    $region32: #{tpu_custom_call.1} parent=1 // pred_region
      _
    $region33: #{tpu_custom_call.1} parent=1 // pred_fallthru
      _
    // Predicated region
    $region34: #{tpu_custom_call.1} parent=1 // pred_check
      _
    $region35: #{tpu_custom_call.1} parent=1 // pred_check_branch
      %112 = sbr.rel (0) target = $region37
    $region36: #{tpu_custom_call.1} parent=1 // pred_region
      %114 = dma.done [#allocation3], 256
    $region37: #{tpu_custom_call.1} parent=1 // pred_fallthru
      _
    // Predicated region
    $region38: #{tpu_custom_call.1} parent=1 // pred_check
      _
    $region39: #{tpu_custom_call.1} parent=1 // pred_check_branch
      %116 = sbr.rel (0) target = $region41
    $region40: #{tpu_custom_call.1} parent=1 // pred_region
      %118 = dma.done [#allocation6], 256
    $region41: #{tpu_custom_call.1} parent=1 // pred_fallthru
      _
    // Predicated region
    $region42: #{tpu_custom_call.1} parent=1 // pred_check
      _
    $region43: #{tpu_custom_call.1} parent=1 // pred_check_branch
      %120 = sbr.rel (0) target = $region45
    $region44: #{tpu_custom_call.1} parent=1 // pred_region
      %122 = dma.done [#allocation6], 256
    $region45: #{tpu_custom_call.1} parent=1 // pred_fallthru
      _
    // Predicated region
    $region46: #{tpu_custom_call.1} parent=1 // pred_check
      _
    $region47: #{tpu_custom_call.1} parent=1 // pred_check_branch
      %124 = sbr.rel (0) target = $region49
    $region48: #{tpu_custom_call.1} parent=1 // pred_region
      %126 = dma.done [#allocation9], 512
    $region49: #{tpu_custom_call.1} parent=1 // pred_fallthru
      _
    // Predicated region
    $region50: #{tpu_custom_call.1} parent=1 // pred_check
      _
    $region51: #{tpu_custom_call.1} parent=1 // pred_check_branch
      %128 = sbr.rel (0) target = $region53
    $region52: #{tpu_custom_call.1} parent=1 // pred_region
      %130 = dma.done [#allocation9], 512
    $region53: #{tpu_custom_call.1} parent=1 // pred_fallthru
      _
    // Predicated region
    $region54: #{tpu_custom_call.1} parent=1 // pred_check
      _
    $region55: #{tpu_custom_call.1} parent=1 // pred_check_branch
      %132 = sbr.rel (0) target = $region57
    $region56: #{tpu_custom_call.1} parent=1 // pred_region
      %134 = dma.done [#allocation12], 512
    $region57: #{tpu_custom_call.1} parent=1 // pred_fallthru
      _
    // Predicated region
    $region58: #{tpu_custom_call.1} parent=1 // pred_check
      _
    $region59: #{tpu_custom_call.1} parent=1 // pred_check_branch
      %136 = sbr.rel (0) target = $region61
    $region60: #{tpu_custom_call.1} parent=1 // pred_region
      %138 = dma.done [#allocation12], 512
    $region61: #{tpu_custom_call.1} parent=1 // pred_fallthru
      _
    %v139 = vld [vmem:[#allocation2] sm:$0xff]
    %v140 = vld [vmem:[#allocation2 + $0x8] sm:$0xff]
    %v141 = vld [vmem:[#allocation5] sm:$0xff]
    %v142 = vld [vmem:[#allocation5 + $0x8] sm:$0xff]
    %v143 = vld [vmem:[#allocation7] sm:$0xff]
    %v144 = vld [vmem:[#allocation7 + $0x8] sm:$0xff]
    %v145 = vld [vmem:[#allocation8] sm:$0xff]
    %v146 = vld [vmem:[#allocation8 + $0x8] sm:$0xff]
    %v147 = vld [vmem:[#allocation8 + $0x10] sm:$0xff]
    %v148 = vld [vmem:[#allocation8 + $0x18] sm:$0xff]
    %vm149 = vcmask 261120
    %v151 = vsel %vm149, %v139, 0
    %v154 = vsel %vm149, %v140, 0
    %156 = vmatpush.msra.mxu0 0.0
    %157 = vmatpush.msra.mxu0 0.0
    %158 = vmatpush.msra.mxu0 0.0
    %159 = vmatpush.msra.mxu0 0.0
    %160 = vmatpush.msra.mxu0 0.0
    %161 = vmatpush.msra.mxu0 0.0
    %162 = vmatpush.msra.mxu0 0.0
    %163 = vmatpush.msra.mxu0 0.0
    %164 = vmatpush.msra.mxu0 0.0
    %165 = vmatpush.msra.mxu0 0.0
    %166 = vmatpush.msra.mxu0 0.0
    %167 = vmatpush.msra.mxu0 0.0
    %168 = vmatpush.msra.mxu0 %v148
    %169 = vmatpush.msra.mxu0 %v147
    %170 = vmatpush.msra.mxu0 %v146
    %171 = vmatpush.msra.mxu0 %v145
    %172 = vmatmul.f32.gmra.mxu0 %v151
    %v173 = vpop.f32.mrf.mxu0
    %v174 = vadd.f32 0.0, %v173
    %175 = vmatmul.f32.gmra.mxu0 %v154
    %v176 = vpop.f32.mrf.mxu0
    %v177 = vadd.f32 0.0, %v176
    %178 = vdwg.mxu0
    %v179 = vld [vmem:[#allocation10] sm:$0xff]
    %v180 = vld [vmem:[#allocation10 + $0x8] sm:$0xff]
    %v181 = vld [vmem:[#allocation10 + $0x10] sm:$0xff]
    %v182 = vld [vmem:[#allocation10 + $0x18] sm:$0xff]
    %v184 = vsel %vm149, %v141, 0
    %v187 = vsel %vm149, %v142, 0
    %189 = vmatpush.msra.mxu0 0.0
    %190 = vmatpush.msra.mxu0 0.0
    %191 = vmatpush.msra.mxu0 0.0
    %192 = vmatpush.msra.mxu0 0.0
    %193 = vmatpush.msra.mxu0 0.0
    %194 = vmatpush.msra.mxu0 0.0
    %195 = vmatpush.msra.mxu0 0.0
    %196 = vmatpush.msra.mxu0 0.0
    %197 = vmatpush.msra.mxu0 0.0
    %198 = vmatpush.msra.mxu0 0.0
    %199 = vmatpush.msra.mxu0 0.0
    %200 = vmatpush.msra.mxu0 0.0
    %201 = vmatpush.msra.mxu0 %v182
    %202 = vmatpush.msra.mxu0 %v181
    %203 = vmatpush.msra.mxu0 %v180
    %204 = vmatpush.msra.mxu0 %v179
    %205 = vmatmul.f32.gmra.mxu0 %v184
    %v206 = vpop.f32.mrf.mxu0
    %v207 = vadd.f32 0.0, %v206
    %208 = vmatmul.f32.gmra.mxu0 %v187
    %v209 = vpop.f32.mrf.mxu0
    %v210 = vadd.f32 0.0, %v209
    %211 = vdwg.mxu0
    %v212 = vld [vmem:[#allocation11] sm:$0xff]
    %v213 = vld [vmem:[#allocation11 + $0x8] sm:$0xff]
    %v214 = vld [vmem:[#allocation11 + $0x10] sm:$0xff]
    %v215 = vld [vmem:[#allocation11 + $0x18] sm:$0xff]
    %v217 = vsel %vm149, %v143, 0
    %v220 = vsel %vm149, %v144, 0
    %222 = vmatpush.msra.mxu0 0.0
    %223 = vmatpush.msra.mxu0 0.0
    %224 = vmatpush.msra.mxu0 0.0
    %225 = vmatpush.msra.mxu0 0.0
    %226 = vmatpush.msra.mxu0 0.0
    %227 = vmatpush.msra.mxu0 0.0
    %228 = vmatpush.msra.mxu0 0.0
    %229 = vmatpush.msra.mxu0 0.0
    %230 = vmatpush.msra.mxu0 0.0
    %231 = vmatpush.msra.mxu0 0.0
    %232 = vmatpush.msra.mxu0 0.0
    %233 = vmatpush.msra.mxu0 0.0
    %234 = vmatpush.msra.mxu0 %v215
    %235 = vmatpush.msra.mxu0 %v214
    %236 = vmatpush.msra.mxu0 %v213
    %237 = vmatpush.msra.mxu0 %v212
    %238 = vmatmul.f32.gmra.mxu0 %v217
    %v239 = vpop.f32.mrf.mxu0
    %v240 = vadd.f32 0.0, %v239
    %241 = vmatmul.f32.gmra.mxu0 %v220
    %v242 = vpop.f32.mrf.mxu0
    %v243 = vadd.f32 0.0, %v242
    %244 = vdwg.mxu0
    %vm245 = vcmask 64512
    %v247 = vsel %vm245, %v174, 0
    %v250 = vsel %vm245, %v207, 0
    %252 = vmatpush.xpose.msra.mxu0 0.0
    %253 = vmatpush.xpose.msra.mxu0 0.0
    %254 = vmatpush.xpose.msra.mxu0 0.0
    %255 = vmatpush.xpose.msra.mxu0 0.0
    %256 = vmatpush.xpose.msra.mxu0 0.0
    %257 = vmatpush.xpose.msra.mxu0 0.0
    %258 = vmatpush.xpose.msra.mxu0 0.0
    %259 = vmatpush.xpose.msra.mxu0 0.0
    %260 = vmatpush.xpose.msra.mxu0 0.0
    %261 = vmatpush.xpose.msra.mxu0 0.0
    %262 = vmatpush.xpose.msra.mxu0 0.0
    %263 = vmatpush.xpose.msra.mxu0 0.0
    %264 = vmatpush.xpose.msra.mxu0 0.0
    %265 = vmatpush.xpose.msra.mxu0 0.0
    %266 = vmatpush.xpose.msra.mxu0 0.0
    %267 = vmatpush.xpose.msra.mxu0 %v250
    %268 = vmatmul.f32.gmra.mxu0 %v247
    %v269 = vpop.f32.mrf.mxu0
    %v270 = vadd.f32 0.0, %v269
    %271 = vdwg.mxu0
    %v273 = vsel %vm245, %v177, 0
    %v276 = vsel %vm245, %v210, 0
    %278 = vmatpush.xpose.msra.mxu0 0.0
    %279 = vmatpush.xpose.msra.mxu0 0.0
    %280 = vmatpush.xpose.msra.mxu0 0.0
    %281 = vmatpush.xpose.msra.mxu0 0.0
    %282 = vmatpush.xpose.msra.mxu0 0.0
    %283 = vmatpush.xpose.msra.mxu0 0.0
    %284 = vmatpush.xpose.msra.mxu0 0.0
    %285 = vmatpush.xpose.msra.mxu0 0.0
    %286 = vmatpush.xpose.msra.mxu0 0.0
    %287 = vmatpush.xpose.msra.mxu0 0.0
    %288 = vmatpush.xpose.msra.mxu0 0.0
    %289 = vmatpush.xpose.msra.mxu0 0.0
    %290 = vmatpush.xpose.msra.mxu0 0.0
    %291 = vmatpush.xpose.msra.mxu0 0.0
    %292 = vmatpush.xpose.msra.mxu0 0.0
    %293 = vmatpush.xpose.msra.mxu0 %v276
    %294 = vmatmul.f32.gmra.mxu0 %v273
    %v295 = vpop.f32.mrf.mxu0
    %v296 = vadd.f32 0.0, %v295
    %297 = vdwg.mxu0
    %v298 = vmul.f32 %v270, 0.17677669
    %v299 = vmul.f32 %v296, 0.17677669
    %v300 = vsel %vm245, %v298, -inf
    %301 = vmax.xlane.f32.xlu0 %v300
    %v302 = vpop.xlane.xlu0 %301
    %v303 = vsel %vm245, %v299, -inf
    %304 = vmax.xlane.f32.xlu0 %v303
    %v305 = vpop.xlane.xlu0 %304
    %v306 = vsub.f32 %v298, %v302
    %v307 = vsub.f32 %v299, %v305
    %v308 = vmul.f32 %v306, 1.442695
    %v309 = vpow.pop %v308
    %v310 = vmul.f32 %v307, 1.442695
    %v311 = vpow.pop %v310
    %v312 = vsel %vm245, %v309, 0.0
    %313 = vadd.xlane.f32.xlu0 %v312
    %v314 = vpop.xlane.xlu0 %313
    %v315 = vsel %vm245, %v311, 0.0
    %316 = vadd.xlane.f32.xlu0 %v315
    %v317 = vpop.xlane.xlu0 %316
    %v318 = vrcp.pop %v314
    %v319 = vmul.f32 %v314, %v318
    %v320 = vsub.f32 1.0, %v319
    %v321 = vmul.f32 %v318, %v320
    %v322 = vadd.f32 %v318, %v321
    %vm323 = vweird.f32 %v314
    %vm324 = vweird.f32 %v318
    %vm325 = vmor %vm323, %vm324
    %v326 = vsel %vm325, %v318, %v322
    %v327 = vand.u32 2147483647, %v314
    %vm328 = vcmp.eq.f32.partialorder %v327, 8.507059e+37
    %v329 = vand.u32 %v314, 2147483648
    %v330 = vor.u32 1.1754944e-38, %v329
    %v331 = vsel %vm328, %v330, %v326
    %v332 = vmul.f32 %v309, %v331
    %v333 = vrcp.pop %v317
    %v334 = vmul.f32 %v317, %v333
    %v335 = vsub.f32 1.0, %v334
    %v336 = vmul.f32 %v333, %v335
    %v337 = vadd.f32 %v333, %v336
    %vm338 = vweird.f32 %v317
    %vm339 = vweird.f32 %v333
    %vm340 = vmor %vm338, %vm339
    %v341 = vsel %vm340, %v333, %v337
    %v342 = vand.u32 2147483647, %v317
    %vm343 = vcmp.eq.f32.partialorder %v342, 8.507059e+37
    %v344 = vand.u32 %v317, 2147483648
    %v345 = vor.u32 1.1754944e-38, %v344
    %v346 = vsel %vm343, %v345, %v341
    %v347 = vmul.f32 %v311, %v346
    %v349 = vsel %vm245, %v332, 0
    %351 = vmatpush.msra.mxu0 0.0
    %352 = vmatpush.msra.mxu0 0.0
    %353 = vmatpush.msra.mxu0 0.0
    %354 = vmatpush.msra.mxu0 0.0
    %355 = vmatpush.msra.mxu0 0.0
    %356 = vmatpush.msra.mxu0 0.0
    %357 = vmatpush.msra.mxu0 0.0
    %358 = vmatpush.msra.mxu0 0.0
    %359 = vmatpush.msra.mxu0 0.0
    %360 = vmatpush.msra.mxu0 0.0
    %361 = vmatpush.msra.mxu0 0.0
    %362 = vmatpush.msra.mxu0 0.0
    %363 = vmatpush.msra.mxu0 0.0
    %364 = vmatpush.msra.mxu0 0.0
    %365 = vmatpush.msra.mxu0 0.0
    %366 = vmatpush.msra.mxu0 %v240
    %367 = vmatmul.f32.gmra.mxu0 %v349
    %v368 = vpop.f32.mrf.mxu0
    %v369 = vadd.f32 0.0, %v368
    %370 = vdwg.mxu0
    %v372 = vsel %vm245, %v347, 0
    %374 = vmatpush.msra.mxu0 0.0
    %375 = vmatpush.msra.mxu0 0.0
    %376 = vmatpush.msra.mxu0 0.0
    %377 = vmatpush.msra.mxu0 0.0
    %378 = vmatpush.msra.mxu0 0.0
    %379 = vmatpush.msra.mxu0 0.0
    %380 = vmatpush.msra.mxu0 0.0
    %381 = vmatpush.msra.mxu0 0.0
    %382 = vmatpush.msra.mxu0 0.0
    %383 = vmatpush.msra.mxu0 0.0
    %384 = vmatpush.msra.mxu0 0.0
    %385 = vmatpush.msra.mxu0 0.0
    %386 = vmatpush.msra.mxu0 0.0
    %387 = vmatpush.msra.mxu0 0.0
    %388 = vmatpush.msra.mxu0 0.0
    %389 = vmatpush.msra.mxu0 %v243
    %390 = vmatmul.f32.gmra.mxu0 %v372
    %v391 = vpop.f32.mrf.mxu0
    %v392 = vadd.f32 0.0, %v391
    %393 = vdwg.mxu0
    %394 = vrot.lane.b32.xlu0 %v174, 120
    %v395 = vpop.permute.xlu0 %394
    %396 = vrot.lane.b32.xlu0 %v207, 120
    %v397 = vpop.permute.xlu0 %396
    %v398 = vsel %vm245, %v395, 0
    %v400 = vsel %vm245, %v397, 0
    %402 = vmatpush.xpose.msra.mxu0 0.0
    %403 = vmatpush.xpose.msra.mxu0 0.0
    %404 = vmatpush.xpose.msra.mxu0 0.0
    %405 = vmatpush.xpose.msra.mxu0 0.0
    %406 = vmatpush.xpose.msra.mxu0 0.0
    %407 = vmatpush.xpose.msra.mxu0 0.0
    %408 = vmatpush.xpose.msra.mxu0 0.0
    %409 = vmatpush.xpose.msra.mxu0 0.0
    %410 = vmatpush.xpose.msra.mxu0 0.0
    %411 = vmatpush.xpose.msra.mxu0 0.0
    %412 = vmatpush.xpose.msra.mxu0 0.0
    %413 = vmatpush.xpose.msra.mxu0 0.0
    %414 = vmatpush.xpose.msra.mxu0 0.0
    %415 = vmatpush.xpose.msra.mxu0 0.0
    %416 = vmatpush.xpose.msra.mxu0 0.0
    %417 = vmatpush.xpose.msra.mxu0 %v400
    %418 = vmatmul.f32.gmra.mxu0 %v398
    %v419 = vpop.f32.mrf.mxu0
    %v420 = vadd.f32 0.0, %v419
    %421 = vdwg.mxu0
    %422 = vrot.lane.b32.xlu0 %v177, 120
    %v423 = vpop.permute.xlu0 %422
    %424 = vrot.lane.b32.xlu0 %v210, 120
    %v425 = vpop.permute.xlu0 %424
    %v426 = vsel %vm245, %v423, 0
    %v428 = vsel %vm245, %v425, 0
    %430 = vmatpush.xpose.msra.mxu0 0.0
    %431 = vmatpush.xpose.msra.mxu0 0.0
    %432 = vmatpush.xpose.msra.mxu0 0.0
    %433 = vmatpush.xpose.msra.mxu0 0.0
    %434 = vmatpush.xpose.msra.mxu0 0.0
    %435 = vmatpush.xpose.msra.mxu0 0.0
    %436 = vmatpush.xpose.msra.mxu0 0.0
    %437 = vmatpush.xpose.msra.mxu0 0.0
    %438 = vmatpush.xpose.msra.mxu0 0.0
    %439 = vmatpush.xpose.msra.mxu0 0.0
    %440 = vmatpush.xpose.msra.mxu0 0.0
    %441 = vmatpush.xpose.msra.mxu0 0.0
    %442 = vmatpush.xpose.msra.mxu0 0.0
    %443 = vmatpush.xpose.msra.mxu0 0.0
    %444 = vmatpush.xpose.msra.mxu0 0.0
    %445 = vmatpush.xpose.msra.mxu0 %v428
    %446 = vmatmul.f32.gmra.mxu0 %v426
    %v447 = vpop.f32.mrf.mxu0
    %v448 = vadd.f32 0.0, %v447
    %449 = vdwg.mxu0
    %v450 = vmul.f32 %v420, 0.17677669
    %v451 = vmul.f32 %v448, 0.17677669
    %v452 = vsel %vm245, %v450, -inf
    %453 = vmax.xlane.f32.xlu0 %v452
    %v454 = vpop.xlane.xlu0 %453
    %v455 = vsel %vm245, %v451, -inf
    %456 = vmax.xlane.f32.xlu0 %v455
    %v457 = vpop.xlane.xlu0 %456
    %v458 = vsub.f32 %v450, %v454
    %v459 = vsub.f32 %v451, %v457
    %v460 = vmul.f32 %v458, 1.442695
    %v461 = vpow.pop %v460
    %v462 = vmul.f32 %v459, 1.442695
    %v463 = vpow.pop %v462
    %v464 = vsel %vm245, %v461, 0.0
    %465 = vadd.xlane.f32.xlu0 %v464
    %v466 = vpop.xlane.xlu0 %465
    %v467 = vsel %vm245, %v463, 0.0
    %468 = vadd.xlane.f32.xlu0 %v467
    %v469 = vpop.xlane.xlu0 %468
    %v470 = vrcp.pop %v466
    %v471 = vmul.f32 %v466, %v470
    %v472 = vsub.f32 1.0, %v471
    %v473 = vmul.f32 %v470, %v472
    %v474 = vadd.f32 %v470, %v473
    %vm475 = vweird.f32 %v466
    %vm476 = vweird.f32 %v470
    %vm477 = vmor %vm475, %vm476
    %v478 = vsel %vm477, %v470, %v474
    %v479 = vand.u32 2147483647, %v466
    %vm480 = vcmp.eq.f32.partialorder %v479, 8.507059e+37
    %v481 = vand.u32 %v466, 2147483648
    %v482 = vor.u32 1.1754944e-38, %v481
    %v483 = vsel %vm480, %v482, %v478
    %v484 = vmul.f32 %v461, %v483
    %v485 = vrcp.pop %v469
    %v486 = vmul.f32 %v469, %v485
    %v487 = vsub.f32 1.0, %v486
    %v488 = vmul.f32 %v485, %v487
    %v489 = vadd.f32 %v485, %v488
    %vm490 = vweird.f32 %v469
    %vm491 = vweird.f32 %v485
    %vm492 = vmor %vm490, %vm491
    %v493 = vsel %vm492, %v485, %v489
    %v494 = vand.u32 2147483647, %v469
    %vm495 = vcmp.eq.f32.partialorder %v494, 8.507059e+37
    %v496 = vand.u32 %v469, 2147483648
    %v497 = vor.u32 1.1754944e-38, %v496
    %v498 = vsel %vm495, %v497, %v493
    %v499 = vmul.f32 %v463, %v498
    %501 = vrot.lane.b32.xlu0 %v240, 120
    %v502 = vpop.permute.xlu0 %501
    %v505 = vsel %vm245, %v484, 0
    %507 = vmatpush.msra.mxu0 0.0
    %508 = vmatpush.msra.mxu0 0.0
    %509 = vmatpush.msra.mxu0 0.0
    %510 = vmatpush.msra.mxu0 0.0
    %511 = vmatpush.msra.mxu0 0.0
    %512 = vmatpush.msra.mxu0 0.0
    %513 = vmatpush.msra.mxu0 0.0
    %514 = vmatpush.msra.mxu0 0.0
    %515 = vmatpush.msra.mxu0 0.0
    %516 = vmatpush.msra.mxu0 0.0
    %517 = vmatpush.msra.mxu0 0.0
    %518 = vmatpush.msra.mxu0 0.0
    %519 = vmatpush.msra.mxu0 0.0
    %520 = vmatpush.msra.mxu0 0.0
    %521 = vmatpush.msra.mxu0 0.0
    %522 = vmatpush.msra.mxu0 %v502
    %523 = vmatmul.f32.gmra.mxu0 %v505
    %v524 = vpop.f32.mrf.mxu0
    %v525 = vadd.f32 0.0, %v524
    %526 = vdwg.mxu0
    %528 = vrot.lane.b32.xlu0 %v243, 120
    %v529 = vpop.permute.xlu0 %528
    %v532 = vsel %vm245, %v499, 0
    %534 = vmatpush.msra.mxu0 0.0
    %535 = vmatpush.msra.mxu0 0.0
    %536 = vmatpush.msra.mxu0 0.0
    %537 = vmatpush.msra.mxu0 0.0
    %538 = vmatpush.msra.mxu0 0.0
    %539 = vmatpush.msra.mxu0 0.0
    %540 = vmatpush.msra.mxu0 0.0
    %541 = vmatpush.msra.mxu0 0.0
    %542 = vmatpush.msra.mxu0 0.0
    %543 = vmatpush.msra.mxu0 0.0
    %544 = vmatpush.msra.mxu0 0.0
    %545 = vmatpush.msra.mxu0 0.0
    %546 = vmatpush.msra.mxu0 0.0
    %547 = vmatpush.msra.mxu0 0.0
    %548 = vmatpush.msra.mxu0 0.0
    %549 = vmatpush.msra.mxu0 %v529
    %550 = vmatmul.f32.gmra.mxu0 %v532
    %v551 = vpop.f32.mrf.mxu0
    %v552 = vadd.f32 0.0, %v551
    %553 = vdwg.mxu0
    %554 = vrot.lane.b32.xlu0 %v174, 112
    %v555 = vpop.permute.xlu0 %554
    %556 = vrot.lane.b32.xlu0 %v207, 112
    %v557 = vpop.permute.xlu0 %556
    %v558 = vsel %vm245, %v555, 0
    %v560 = vsel %vm245, %v557, 0
    %562 = vmatpush.xpose.msra.mxu0 0.0
    %563 = vmatpush.xpose.msra.mxu0 0.0
    %564 = vmatpush.xpose.msra.mxu0 0.0
    %565 = vmatpush.xpose.msra.mxu0 0.0
    %566 = vmatpush.xpose.msra.mxu0 0.0
    %567 = vmatpush.xpose.msra.mxu0 0.0
    %568 = vmatpush.xpose.msra.mxu0 0.0
    %569 = vmatpush.xpose.msra.mxu0 0.0
    %570 = vmatpush.xpose.msra.mxu0 0.0
    %571 = vmatpush.xpose.msra.mxu0 0.0
    %572 = vmatpush.xpose.msra.mxu0 0.0
    %573 = vmatpush.xpose.msra.mxu0 0.0
    %574 = vmatpush.xpose.msra.mxu0 0.0
    %575 = vmatpush.xpose.msra.mxu0 0.0
    %576 = vmatpush.xpose.msra.mxu0 0.0
    %577 = vmatpush.xpose.msra.mxu0 %v560
    %578 = vmatmul.f32.gmra.mxu0 %v558
    %v579 = vpop.f32.mrf.mxu0
    %v580 = vadd.f32 0.0, %v579
    %581 = vdwg.mxu0
    %582 = vrot.lane.b32.xlu0 %v177, 112
    %v583 = vpop.permute.xlu0 %582
    %584 = vrot.lane.b32.xlu0 %v210, 112
    %v585 = vpop.permute.xlu0 %584
    %v586 = vsel %vm245, %v583, 0
    %v588 = vsel %vm245, %v585, 0
    %590 = vmatpush.xpose.msra.mxu0 0.0
    %591 = vmatpush.xpose.msra.mxu0 0.0
    %592 = vmatpush.xpose.msra.mxu0 0.0
    %593 = vmatpush.xpose.msra.mxu0 0.0
    %594 = vmatpush.xpose.msra.mxu0 0.0
    %595 = vmatpush.xpose.msra.mxu0 0.0
    %596 = vmatpush.xpose.msra.mxu0 0.0
    %597 = vmatpush.xpose.msra.mxu0 0.0
    %598 = vmatpush.xpose.msra.mxu0 0.0
    %599 = vmatpush.xpose.msra.mxu0 0.0
    %600 = vmatpush.xpose.msra.mxu0 0.0
    %601 = vmatpush.xpose.msra.mxu0 0.0
    %602 = vmatpush.xpose.msra.mxu0 0.0
    %603 = vmatpush.xpose.msra.mxu0 0.0
    %604 = vmatpush.xpose.msra.mxu0 0.0
    %605 = vmatpush.xpose.msra.mxu0 %v588
    %606 = vmatmul.f32.gmra.mxu0 %v586
    %v607 = vpop.f32.mrf.mxu0
    %v608 = vadd.f32 0.0, %v607
    %609 = vdwg.mxu0
    %v610 = vmul.f32 %v580, 0.17677669
    %v611 = vmul.f32 %v608, 0.17677669
    %v612 = vsel %vm245, %v610, -inf
    %613 = vmax.xlane.f32.xlu0 %v612
    %v614 = vpop.xlane.xlu0 %613
    %v615 = vsel %vm245, %v611, -inf
    %616 = vmax.xlane.f32.xlu0 %v615
    %v617 = vpop.xlane.xlu0 %616
    %v618 = vsub.f32 %v610, %v614
    %v619 = vsub.f32 %v611, %v617
    %v620 = vmul.f32 %v618, 1.442695
    %v621 = vpow.pop %v620
    %v622 = vmul.f32 %v619, 1.442695
    %v623 = vpow.pop %v622
    %v624 = vsel %vm245, %v621, 0.0
    %625 = vadd.xlane.f32.xlu0 %v624
    %v626 = vpop.xlane.xlu0 %625
    %v627 = vsel %vm245, %v623, 0.0
    %628 = vadd.xlane.f32.xlu0 %v627
    %v629 = vpop.xlane.xlu0 %628
    %v630 = vrcp.pop %v626
    %v631 = vmul.f32 %v626, %v630
    %v632 = vsub.f32 1.0, %v631
    %v633 = vmul.f32 %v630, %v632
    %v634 = vadd.f32 %v630, %v633
    %vm635 = vweird.f32 %v626
    %vm636 = vweird.f32 %v630
    %vm637 = vmor %vm635, %vm636
    %v638 = vsel %vm637, %v630, %v634
    %v639 = vand.u32 2147483647, %v626
    %vm640 = vcmp.eq.f32.partialorder %v639, 8.507059e+37
    %v641 = vand.u32 %v626, 2147483648
    %v642 = vor.u32 1.1754944e-38, %v641
    %v643 = vsel %vm640, %v642, %v638
    %v644 = vmul.f32 %v621, %v643
    %v645 = vrcp.pop %v629
    %v646 = vmul.f32 %v629, %v645
    %v647 = vsub.f32 1.0, %v646
    %v648 = vmul.f32 %v645, %v647
    %v649 = vadd.f32 %v645, %v648
    %vm650 = vweird.f32 %v629
    %vm651 = vweird.f32 %v645
    %vm652 = vmor %vm650, %vm651
    %v653 = vsel %vm652, %v645, %v649
    %v654 = vand.u32 2147483647, %v629
    %vm655 = vcmp.eq.f32.partialorder %v654, 8.507059e+37
    %v656 = vand.u32 %v629, 2147483648
    %v657 = vor.u32 1.1754944e-38, %v656
    %v658 = vsel %vm655, %v657, %v653
    %v659 = vmul.f32 %v623, %v658
    %660 = vrot.lane.b32.xlu0 %v240, 112
    %v661 = vpop.permute.xlu0 %660
    %v664 = vsel %vm245, %v644, 0
    %666 = vmatpush.msra.mxu0 0.0
    %667 = vmatpush.msra.mxu0 0.0
    %668 = vmatpush.msra.mxu0 0.0
    %669 = vmatpush.msra.mxu0 0.0
    %670 = vmatpush.msra.mxu0 0.0
    %671 = vmatpush.msra.mxu0 0.0
    %672 = vmatpush.msra.mxu0 0.0
    %673 = vmatpush.msra.mxu0 0.0
    %674 = vmatpush.msra.mxu0 0.0
    %675 = vmatpush.msra.mxu0 0.0
    %676 = vmatpush.msra.mxu0 0.0
    %677 = vmatpush.msra.mxu0 0.0
    %678 = vmatpush.msra.mxu0 0.0
    %679 = vmatpush.msra.mxu0 0.0
    %680 = vmatpush.msra.mxu0 0.0
    %681 = vmatpush.msra.mxu0 %v661
    %682 = vmatmul.f32.gmra.mxu0 %v664
    %v683 = vpop.f32.mrf.mxu0
    %v684 = vadd.f32 0.0, %v683
    %685 = vdwg.mxu0
    %686 = vrot.lane.b32.xlu0 %v243, 112
    %v687 = vpop.permute.xlu0 %686
    %v690 = vsel %vm245, %v659, 0
    %692 = vmatpush.msra.mxu0 0.0
    %693 = vmatpush.msra.mxu0 0.0
    %694 = vmatpush.msra.mxu0 0.0
    %695 = vmatpush.msra.mxu0 0.0
    %696 = vmatpush.msra.mxu0 0.0
    %697 = vmatpush.msra.mxu0 0.0
    %698 = vmatpush.msra.mxu0 0.0
    %699 = vmatpush.msra.mxu0 0.0
    %700 = vmatpush.msra.mxu0 0.0
    %701 = vmatpush.msra.mxu0 0.0
    %702 = vmatpush.msra.mxu0 0.0
    %703 = vmatpush.msra.mxu0 0.0
    %704 = vmatpush.msra.mxu0 0.0
    %705 = vmatpush.msra.mxu0 0.0
    %706 = vmatpush.msra.mxu0 0.0
    %707 = vmatpush.msra.mxu0 %v687
    %708 = vmatmul.f32.gmra.mxu0 %v690
    %v709 = vpop.f32.mrf.mxu0
    %v710 = vadd.f32 0.0, %v709
    %711 = vdwg.mxu0
    %712 = vrot.lane.b32.xlu0 %v174, 104
    %v713 = vpop.permute.xlu0 %712
    %714 = vrot.lane.b32.xlu0 %v207, 104
    %v715 = vpop.permute.xlu0 %714
    %v716 = vsel %vm245, %v713, 0
    %v718 = vsel %vm245, %v715, 0
    %720 = vmatpush.xpose.msra.mxu0 0.0
    %721 = vmatpush.xpose.msra.mxu0 0.0
    %722 = vmatpush.xpose.msra.mxu0 0.0
    %723 = vmatpush.xpose.msra.mxu0 0.0
    %724 = vmatpush.xpose.msra.mxu0 0.0
    %725 = vmatpush.xpose.msra.mxu0 0.0
    %726 = vmatpush.xpose.msra.mxu0 0.0
    %727 = vmatpush.xpose.msra.mxu0 0.0
    %728 = vmatpush.xpose.msra.mxu0 0.0
    %729 = vmatpush.xpose.msra.mxu0 0.0
    %730 = vmatpush.xpose.msra.mxu0 0.0
    %731 = vmatpush.xpose.msra.mxu0 0.0
    %732 = vmatpush.xpose.msra.mxu0 0.0
    %733 = vmatpush.xpose.msra.mxu0 0.0
    %734 = vmatpush.xpose.msra.mxu0 0.0
    %735 = vmatpush.xpose.msra.mxu0 %v718
    %736 = vmatmul.f32.gmra.mxu0 %v716
    %v737 = vpop.f32.mrf.mxu0
    %v738 = vadd.f32 0.0, %v737
    %739 = vdwg.mxu0
    %740 = vrot.lane.b32.xlu0 %v177, 104
    %v741 = vpop.permute.xlu0 %740
    %742 = vrot.lane.b32.xlu0 %v210, 104
    %v743 = vpop.permute.xlu0 %742
    %v744 = vsel %vm245, %v741, 0
    %v746 = vsel %vm245, %v743, 0
    %748 = vmatpush.xpose.msra.mxu0 0.0
    %749 = vmatpush.xpose.msra.mxu0 0.0
    %750 = vmatpush.xpose.msra.mxu0 0.0
    %751 = vmatpush.xpose.msra.mxu0 0.0
    %752 = vmatpush.xpose.msra.mxu0 0.0
    %753 = vmatpush.xpose.msra.mxu0 0.0
    %754 = vmatpush.xpose.msra.mxu0 0.0
    %755 = vmatpush.xpose.msra.mxu0 0.0
    %756 = vmatpush.xpose.msra.mxu0 0.0
    %757 = vmatpush.xpose.msra.mxu0 0.0
    %758 = vmatpush.xpose.msra.mxu0 0.0
    %759 = vmatpush.xpose.msra.mxu0 0.0
    %760 = vmatpush.xpose.msra.mxu0 0.0
    %761 = vmatpush.xpose.msra.mxu0 0.0
    %762 = vmatpush.xpose.msra.mxu0 0.0
    %763 = vmatpush.xpose.msra.mxu0 %v746
    %764 = vmatmul.f32.gmra.mxu0 %v744
    %v765 = vpop.f32.mrf.mxu0
    %v766 = vadd.f32 0.0, %v765
    %767 = vdwg.mxu0
    %v768 = vmul.f32 %v738, 0.17677669
    %v769 = vmul.f32 %v766, 0.17677669
    %v770 = vsel %vm245, %v768, -inf
    %771 = vmax.xlane.f32.xlu0 %v770
    %v772 = vpop.xlane.xlu0 %771
    %v773 = vsel %vm245, %v769, -inf
    %774 = vmax.xlane.f32.xlu0 %v773
    %v775 = vpop.xlane.xlu0 %774
    %v776 = vsub.f32 %v768, %v772
    %v777 = vsub.f32 %v769, %v775
    %v778 = vmul.f32 %v776, 1.442695
    %v779 = vpow.pop %v778
    %v780 = vmul.f32 %v777, 1.442695
    %v781 = vpow.pop %v780
    %v782 = vsel %vm245, %v779, 0.0
    %783 = vadd.xlane.f32.xlu0 %v782
    %v784 = vpop.xlane.xlu0 %783
    %v785 = vsel %vm245, %v781, 0.0
    %786 = vadd.xlane.f32.xlu0 %v785
    %v787 = vpop.xlane.xlu0 %786
    %v788 = vrcp.pop %v784
    %v789 = vmul.f32 %v784, %v788
    %v790 = vsub.f32 1.0, %v789
    %v791 = vmul.f32 %v788, %v790
    %v792 = vadd.f32 %v788, %v791
    %vm793 = vweird.f32 %v784
    %vm794 = vweird.f32 %v788
    %vm795 = vmor %vm793, %vm794
    %v796 = vsel %vm795, %v788, %v792
    %v797 = vand.u32 2147483647, %v784
    %vm798 = vcmp.eq.f32.partialorder %v797, 8.507059e+37
    %v799 = vand.u32 %v784, 2147483648
    %v800 = vor.u32 1.1754944e-38, %v799
    %v801 = vsel %vm798, %v800, %v796
    %v802 = vmul.f32 %v779, %v801
    %v803 = vrcp.pop %v787
    %v804 = vmul.f32 %v787, %v803
    %v805 = vsub.f32 1.0, %v804
    %v806 = vmul.f32 %v803, %v805
    %v807 = vadd.f32 %v803, %v806
    %vm808 = vweird.f32 %v787
    %vm809 = vweird.f32 %v803
    %vm810 = vmor %vm808, %vm809
    %v811 = vsel %vm810, %v803, %v807
    %v812 = vand.u32 2147483647, %v787
    %vm813 = vcmp.eq.f32.partialorder %v812, 8.507059e+37
    %v814 = vand.u32 %v787, 2147483648
    %v815 = vor.u32 1.1754944e-38, %v814
    %v816 = vsel %vm813, %v815, %v811
    %v817 = vmul.f32 %v781, %v816
    %818 = vrot.lane.b32.xlu0 %v240, 104
    %v819 = vpop.permute.xlu0 %818
    %v822 = vsel %vm245, %v802, 0
    %824 = vmatpush.msra.mxu0 0.0
    %825 = vmatpush.msra.mxu0 0.0
    %826 = vmatpush.msra.mxu0 0.0
    %827 = vmatpush.msra.mxu0 0.0
    %828 = vmatpush.msra.mxu0 0.0
    %829 = vmatpush.msra.mxu0 0.0
    %830 = vmatpush.msra.mxu0 0.0
    %831 = vmatpush.msra.mxu0 0.0
    %832 = vmatpush.msra.mxu0 0.0
    %833 = vmatpush.msra.mxu0 0.0
    %834 = vmatpush.msra.mxu0 0.0
    %835 = vmatpush.msra.mxu0 0.0
    %836 = vmatpush.msra.mxu0 0.0
    %837 = vmatpush.msra.mxu0 0.0
    %838 = vmatpush.msra.mxu0 0.0
    %839 = vmatpush.msra.mxu0 %v819
    %840 = vmatmul.f32.gmra.mxu0 %v822
    %v841 = vpop.f32.mrf.mxu0
    %v842 = vadd.f32 0.0, %v841
    %843 = vdwg.mxu0
    %844 = vrot.lane.b32.xlu0 %v243, 104
    %v845 = vpop.permute.xlu0 %844
    %v848 = vsel %vm245, %v817, 0
    %850 = vmatpush.msra.mxu0 0.0
    %851 = vmatpush.msra.mxu0 0.0
    %852 = vmatpush.msra.mxu0 0.0
    %853 = vmatpush.msra.mxu0 0.0
    %854 = vmatpush.msra.mxu0 0.0
    %855 = vmatpush.msra.mxu0 0.0
    %856 = vmatpush.msra.mxu0 0.0
    %857 = vmatpush.msra.mxu0 0.0
    %858 = vmatpush.msra.mxu0 0.0
    %859 = vmatpush.msra.mxu0 0.0
    %860 = vmatpush.msra.mxu0 0.0
    %861 = vmatpush.msra.mxu0 0.0
    %862 = vmatpush.msra.mxu0 0.0
    %863 = vmatpush.msra.mxu0 0.0
    %864 = vmatpush.msra.mxu0 0.0
    %865 = vmatpush.msra.mxu0 %v845
    %866 = vmatmul.f32.gmra.mxu0 %v848
    %v867 = vpop.f32.mrf.mxu0
    %v868 = vadd.f32 0.0, %v867
    %869 = vdwg.mxu0
    %872 = vrot.lane.b32.xlu0 %v525, 8
    %v873 = vpop.permute.xlu0 %872
    %874 = vrot.lane.b32.xlu0 %v552, 8
    %v875 = vpop.permute.xlu0 %874
    %880 = vrot.lane.b32.xlu0 %v684, 16
    %v881 = vpop.permute.xlu0 %880
    %882 = vrot.lane.b32.xlu0 %v710, 16
    %v883 = vpop.permute.xlu0 %882
    %888 = vrot.lane.b32.xlu0 %v842, 24
    %v889 = vpop.permute.xlu0 %888
    %890 = vrot.lane.b32.xlu0 %v868, 24
    %v891 = vpop.permute.xlu0 %890
    %v894 = vsel %vm245, %v369, %v873
    %v895 = vsel %vm245, %v392, %v875
    %vm896 = vcmask 130048
    %v897 = vsel %vm896, %v894, %v881
    %v898 = vsel %vm896, %v895, %v883
    %vm899 = vcmask 195584
    %v900 = vsel %vm899, %v897, %v889
    %v901 = vsel %vm899, %v898, %v891
    %v902 = vld [vmem:[#allocation13] sm:$0xff]
    %v903 = vld [vmem:[#allocation13 + $0x8] sm:$0xff]
    %v904 = vld [vmem:[#allocation13 + $0x10] sm:$0xff]
    %v905 = vld [vmem:[#allocation13 + $0x18] sm:$0xff]
    %v906 = vld [vmem:[%s7] sm:$0x1]
    %v908 = vperm.slane %v906, 0
    %v911 = vsel %vm149, %v900, 0
    %v914 = vsel %vm149, %v901, 0
    %916 = vmatpush.msra.mxu0 0.0
    %917 = vmatpush.msra.mxu0 0.0
    %918 = vmatpush.msra.mxu0 0.0
    %919 = vmatpush.msra.mxu0 0.0
    %920 = vmatpush.msra.mxu0 0.0
    %921 = vmatpush.msra.mxu0 0.0
    %922 = vmatpush.msra.mxu0 0.0
    %923 = vmatpush.msra.mxu0 0.0
    %924 = vmatpush.msra.mxu0 0.0
    %925 = vmatpush.msra.mxu0 0.0
    %926 = vmatpush.msra.mxu0 0.0
    %927 = vmatpush.msra.mxu0 0.0
    %928 = vmatpush.msra.mxu0 %v905
    %929 = vmatpush.msra.mxu0 %v904
    %930 = vmatpush.msra.mxu0 %v903
    %931 = vmatpush.msra.mxu0 %v902
    %932 = vmatmul.f32.gmra.mxu0 %v911
    %v933 = vpop.f32.mrf.mxu0
    %v934 = vadd.f32 %v908, %v933
    %935 = vmatmul.f32.gmra.mxu0 %v914
    %v936 = vpop.f32.mrf.mxu0
    %v937 = vadd.f32 %v908, %v936
    %938 = vdwg.mxu0
    %939 = vst.msk [vmem:[#allocation14] sm:$0xff] %vm149, %v934
    %940 = vst.msk [vmem:[#allocation14 + $0x8] sm:$0xff] %vm149, %v937
    // Predicated region
    $region62: #{tpu_custom_call.1} parent=1 // pred_check
      _
    $region63: #{tpu_custom_call.1} parent=1 // pred_check_branch
      %942 = sbr.rel (0) target = $region65
    $region64: #{tpu_custom_call.1} parent=1 // pred_region
      %944 = vsyncadd [#allocation4], 0
      %s945 = sshll.u32 [#allocation14], 4
      %s946 = int_to_ptr.vmem [resolvable:$true] %s945
      %s947 = sshll.u32 %s8, 4
      %s948 = int_to_ptr.hbm [resolvable:$true] %s947
      %953 = dma.vmem_to_hbm [thread:$0]  %s946, 256, %s948, [#allocation4], 128, 128, 8
    $region65: #{tpu_custom_call.1} parent=1 // pred_fallthru
      _
    // Predicated region
    $region66: #{tpu_custom_call.1} parent=1 // pred_check
      _
    $region67: #{tpu_custom_call.1} parent=1 // pred_check_branch
      %955 = sbr.rel (0) target = $region69
    $region68: #{tpu_custom_call.1} parent=1 // pred_region
      %957 = dma.done [#allocation4], 256
    $region69: #{tpu_custom_call.1} parent=1 // pred_fallthru
      _
    %958 = vsyncpa [#allocation3], 1
    %959 = vsyncpa [#allocation6], 1
    %960 = vsyncpa [#allocation9], 1
    %961 = vsyncpa [#allocation12], 1
    %962 = vsyncpa [#allocation4], 1

</llo_original>
